<compile_context>
chip_gen: v7x
topology: tpu7x:2x2x1
jax: 0.10.0
libtpu: 0.0.40
codegen_flags: <defaults>
</compile_context>

<pallas_src>
import jax
import jax.numpy as jnp
from jax.experimental import pallas as pl
from jax.experimental.pallas import tpu as pltpu

LANE = 128       # TPU lane width
SUBLANE = 8      # f32 sublane count


def _round_up(n, m):
    return (n + m - 1) // m * m


def critic_kernel(x_ref, wi_ref, w1_ref, w2_ref, wf_ref, b_ref, out_ref):
    """One batch tile of the critic forward pass.

    x_ref  : (TB, S)        batch tile (batch on sublanes)
    wi_ref : (S,  Hp)       layer-0 weight, pre-transposed + zero-padded
    w1/w2  : (Hp, Hp)       hidden weights (VMEM-resident across the grid)
    wf_ref : (Hp, 1) f32    final weight as a column (VPU path, stays f32)
    b_ref  : (8, Hp) f32    rows 0..2 = bi,b1,b2 (zero-padded); b[3,0] = bf
    out_ref: (1, 1, TB)     values with batch on the lane axis (dense store)
    """
    cd = wi_ref.dtype                      # MXU input dtype (f32 or bf16)
    b = b_ref[...]                         # (8, Hp) f32

    x = x_ref[...].astype(cd)              # (TB, S)

    h = jnp.dot(x, wi_ref[...], preferred_element_type=jnp.float32)
    h = jnp.maximum(h + b[0:1, :], 0.0)                       # f32 bias + ReLU

    h = jnp.dot(h.astype(cd), w1_ref[...], preferred_element_type=jnp.float32)
    h = jnp.maximum(h + b[1:2, :], 0.0)

    h = jnp.dot(h.astype(cd), w2_ref[...], preferred_element_type=jnp.float32)
    h = jnp.maximum(h + b[2:3, :], 0.0)

    # Final Hp->1 layer: transpose (XLU) + multiply (VPU) + sublane reduce
    # instead of an N=1 MXU matmul. Result (1, TB) is already lane-oriented.
    ht = h.T                                                  # (Hp, TB)
    v = jnp.sum(ht * wf_ref[...], axis=0, keepdims=True)      # (1, TB) f32
    v = v + b[3:4, 0:1]                                       # + final bias
    out_ref[...] = v[None].astype(out_ref.dtype)              # (1, 1, TB)


def pack_critic_params(params, *, hidden_pad=LANE, compute_dtype=jnp.float32):
    """Zero-pad hidden dim to a lane multiple and pack biases into one tile."""
    S, H = params["wi"].shape
    Hp = _round_up(max(H, hidden_pad), LANE)
    f32 = jnp.float32

    wi = jnp.zeros((S, Hp), f32).at[:, :H].set(params["wi"])
    w1 = jnp.zeros((Hp, Hp), f32).at[:H, :H].set(params["w1"])
    w2 = jnp.zeros((Hp, Hp), f32).at[:H, :H].set(params["w2"])
    wf = jnp.zeros((Hp, 1), f32).at[:H, :].set(params["wf"])

    b = jnp.zeros((SUBLANE, Hp), f32)
    b = b.at[0, :H].set(params["bi"])
    b = b.at[1, :H].set(params["b1"])
    b = b.at[2, :H].set(params["b2"])
    b = b.at[3, 0].set(params["bf"][0])

    return {
        "wi": wi.astype(compute_dtype),     # MXU inputs: f32 or bf16
        "w1": w1.astype(compute_dtype),
        "w2": w2.astype(compute_dtype),
        "wf": wf,                           # VPU-only: keep f32
        "b": b,                             # f32 biases (single VMEM tile)
        "hidden_pad": Hp,
        "compute_dtype": compute_dtype,
    }


def critic_forward(x, packed, *, tile_batch=LANE):
    """x: (B, state_dim) f32. Returns (B, 1) f32 critic values."""
    B, S = x.shape
    Hp = packed["hidden_pad"]
    cd = packed["compute_dtype"]
    TB = tile_batch
    assert TB % LANE == 0, "batch tile must be a multiple of 128 (lane width)"

    B_pad = _round_up(max(B, TB), TB)
    n_tiles = B_pad // TB

    x_pad = jnp.zeros((B_pad, S), cd).at[:B, :].set(x.astype(cd))

    out = pl.pallas_call(
        critic_kernel,
        out_shape=jax.ShapeDtypeStruct((n_tiles, 1, TB), jnp.float32),
        grid_spec=pl.GridSpec(
            grid=(n_tiles,),
            in_specs=[
                pl.BlockSpec((TB, S), lambda i: (i, 0)),        # x: batch-tiled
                pl.BlockSpec((S, Hp), lambda i: (0, 0)),        # weights stay
                pl.BlockSpec((Hp, Hp), lambda i: (0, 0)),       #   VMEM-resident
                pl.BlockSpec((Hp, Hp), lambda i: (0, 0)),
                pl.BlockSpec((Hp, 1), lambda i: (0, 0)),
                pl.BlockSpec((SUBLANE, Hp), lambda i: (0, 0)),  # packed biases
            ],
            out_specs=pl.BlockSpec((1, 1, TB), lambda i: (i, 0, 0)),
        ),
        compiler_params=pltpu.CompilerParams(
            dimension_semantics=("parallel",),   # shard batch tiles across TCs (v7x)
        ),
    )(x_pad, packed["wi"], packed["w1"], packed["w2"], packed["wf"], packed["b"])

    # (n_tiles, 1, TB) -> (B_pad, 1) -> drop batch padding
    return out.reshape(B_pad, 1)[:B]


def init_critic_params(key, state_dim, hidden_dim):
    """nn.Linear-style init (uniform +-1/sqrt(fan_in)); weights stored (in, out)."""
    def linear(k, fan_in, fan_out):
        kw, kb = jax.random.split(k)
        bound = 1.0 / float(jnp.sqrt(jnp.float32(fan_in)))
        w = jax.random.uniform(kw, (fan_in, fan_out), jnp.float32, -bound, bound)
        b = jax.random.uniform(kb, (fan_out,), jnp.float32, -bound, bound)
        return w, b

    k0, k1, k2, k3 = jax.random.split(key, 4)
    wi, bi = linear(k0, state_dim, hidden_dim)
    w1, b1 = linear(k1, hidden_dim, hidden_dim)
    w2, b2 = linear(k2, hidden_dim, hidden_dim)
    wf, bf = linear(k3, hidden_dim, 1)
    return {"wi": wi, "bi": bi, "w1": w1, "b1": b1,
            "w2": w2, "b2": b2, "wf": wf, "bf": bf}


def critic_reference(x, p):
    h = jax.nn.relu(x @ p["wi"] + p["bi"])
    h = jax.nn.relu(h @ p["w1"] + p["b1"])
    h = jax.nn.relu(h @ p["w2"] + p["b2"])
    return h @ p["wf"] + p["bf"]


if __name__ == "__main__":
    key = jax.random.PRNGKey(0)
    k_param, k_x = jax.random.split(key)

    state_dim, hidden_dim = 4, 32
    params = init_critic_params(k_param, state_dim, hidden_dim)

    # Small demo batch (exercises batch padding inside one tile).
    batch = 8
    x = jax.random.normal(k_x, (batch, state_dim), dtype=jnp.float32)
    ref = critic_reference(x, params)

    # f32 MXU-input path (v5e-friendly): exact match to reference.
    packed_f32 = pack_critic_params(params, compute_dtype=jnp.float32)
    v_f32 = critic_forward(x, packed_f32)
    jax.block_until_ready(v_f32)
    assert v_f32.shape == (batch, 1)
    assert jnp.allclose(v_f32, ref, atol=1e-5, rtol=1e-5)

    # bf16 MXU-input path (v6e/v7x): f32 accumulation/bias/ReLU, loose tolerance.
    packed_bf16 = pack_critic_params(params, compute_dtype=jnp.bfloat16)
    v_bf16 = critic_forward(x, packed_bf16)
    jax.block_until_ready(v_bf16)
    assert jnp.allclose(v_bf16, ref, atol=5e-2, rtol=5e-2)

    # Multi-tile batch grid (non-multiple of 128 -> padding + 3 grid steps).
    big_batch = 300
    xb = jax.random.normal(k_x, (big_batch, state_dim), dtype=jnp.float32)
    vb = critic_forward(xb, packed_f32)
    jax.block_until_ready(vb)
    assert vb.shape == (big_batch, 1)
    assert jnp.allclose(vb, critic_reference(xb, params), atol=1e-5, rtol=1e-5)

    print("KERNEL_OK")
</pallas_src>

<mosaic_0001>
module attributes {stable_mosaic.version = 11 : i64} {
  func.func @critic_kernel(%arg0: i32, %arg1: memref<128x4xf32, #tpu.memory_space<vmem>>, %arg2: memref<4x128xf32, #tpu.memory_space<vmem>>, %arg3: memref<128x128xf32, #tpu.memory_space<vmem>>, %arg4: memref<128x128xf32, #tpu.memory_space<vmem>>, %arg5: memref<128x1xf32, #tpu.memory_space<vmem>>, %arg6: memref<8x128xf32, #tpu.memory_space<vmem>>, %arg7: memref<1x1x128xf32, #tpu.memory_space<vmem>>) attributes {dimension_semantics = [#tpu.dimension_semantics<parallel>], iteration_bounds = array<i64: 1>, scalar_prefetch = 0 : i64, scratch_operands = 0 : i64, tpu.core_type = #tpu.core_type<tc>, window_params = [{transform_indices = @transform_0, window_bounds = array<i64: 128, 4>}, {pipeline_mode = #tpu.pipeline_mode<synchronous>, transform_indices = @transform_1, window_bounds = array<i64: 4, 128>}, {pipeline_mode = #tpu.pipeline_mode<synchronous>, transform_indices = @transform_2, window_bounds = array<i64: 128, 128>}, {pipeline_mode = #tpu.pipeline_mode<synchronous>, transform_indices = @transform_3, window_bounds = array<i64: 128, 128>}, {pipeline_mode = #tpu.pipeline_mode<synchronous>, transform_indices = @transform_4, window_bounds = array<i64: 128, 1>}, {pipeline_mode = #tpu.pipeline_mode<synchronous>, transform_indices = @transform_5, window_bounds = array<i64: 8, 128>}, {transform_indices = @transform_6, window_bounds = array<i64: 1, 1, 128>}]} {
    %c0 = arith.constant 0 : index
    %c0_0 = arith.constant 0 : index
    %0 = vector.load %arg6[%c0, %c0_0] : memref<8x128xf32, #tpu.memory_space<vmem>>, vector<8x128xf32>
    %c0_1 = arith.constant 0 : index
    %c0_2 = arith.constant 0 : index
    %1 = vector.load %arg1[%c0_1, %c0_2] : memref<128x4xf32, #tpu.memory_space<vmem>>, vector<128x4xf32>
    %c0_3 = arith.constant 0 : index
    %c0_4 = arith.constant 0 : index
    %2 = vector.load %arg2[%c0_3, %c0_4] : memref<4x128xf32, #tpu.memory_space<vmem>>, vector<4x128xf32>
    %cst = arith.constant dense<0.000000e+00> : vector<128x128xf32>
    %3 = tpu.matmul %1, %2, %cst {dimension_numbers = #tpu.dot_dimension_numbers<[1], [0], [0], [1], [0, 0, 1, 1], [], []>} : vector<128x4xf32>, vector<4x128xf32>, vector<128x128xf32> -> vector<128x128xf32>
    %4 = vector.extract_strided_slice %0 {offsets = [0, 0], sizes = [1, 128], strides = [1, 1]} : vector<8x128xf32> to vector<1x128xf32>
    %5 = vector.broadcast %4 : vector<1x128xf32> to vector<128x128xf32>
    %6 = arith.addf %3, %5 : vector<128x128xf32>
    %cst_5 = arith.constant 0.000000e+00 : f32
    %7 = vector.broadcast %cst_5 : f32 to vector<128x128xf32>
    %8 = arith.maximumf %6, %7 : vector<128x128xf32>
    %c0_6 = arith.constant 0 : index
    %c0_7 = arith.constant 0 : index
    %9 = vector.load %arg3[%c0_6, %c0_7] : memref<128x128xf32, #tpu.memory_space<vmem>>, vector<128x128xf32>
    %cst_8 = arith.constant dense<0.000000e+00> : vector<128x128xf32>
    %10 = tpu.matmul %8, %9, %cst_8 {dimension_numbers = #tpu.dot_dimension_numbers<[1], [0], [0], [1], [0, 0, 1, 1], [], []>} : vector<128x128xf32>, vector<128x128xf32>, vector<128x128xf32> -> vector<128x128xf32>
    %11 = vector.extract_strided_slice %0 {offsets = [1, 0], sizes = [1, 128], strides = [1, 1]} : vector<8x128xf32> to vector<1x128xf32>
    %12 = vector.broadcast %11 : vector<1x128xf32> to vector<128x128xf32>
    %13 = arith.addf %10, %12 : vector<128x128xf32>
    %cst_9 = arith.constant 0.000000e+00 : f32
    %14 = vector.broadcast %cst_9 : f32 to vector<128x128xf32>
    %15 = arith.maximumf %13, %14 : vector<128x128xf32>
    %c0_10 = arith.constant 0 : index
    %c0_11 = arith.constant 0 : index
    %16 = vector.load %arg4[%c0_10, %c0_11] : memref<128x128xf32, #tpu.memory_space<vmem>>, vector<128x128xf32>
    %cst_12 = arith.constant dense<0.000000e+00> : vector<128x128xf32>
    %17 = tpu.matmul %15, %16, %cst_12 {dimension_numbers = #tpu.dot_dimension_numbers<[1], [0], [0], [1], [0, 0, 1, 1], [], []>} : vector<128x128xf32>, vector<128x128xf32>, vector<128x128xf32> -> vector<128x128xf32>
    %18 = vector.extract_strided_slice %0 {offsets = [2, 0], sizes = [1, 128], strides = [1, 1]} : vector<8x128xf32> to vector<1x128xf32>
    %19 = vector.broadcast %18 : vector<1x128xf32> to vector<128x128xf32>
    %20 = arith.addf %17, %19 : vector<128x128xf32>
    %cst_13 = arith.constant 0.000000e+00 : f32
    %21 = vector.broadcast %cst_13 : f32 to vector<128x128xf32>
    %22 = arith.maximumf %20, %21 : vector<128x128xf32>
    %23 = tpu.transpose %22, [1, 0] : vector<128x128xf32> -> vector<128x128xf32>
    %c0_14 = arith.constant 0 : index
    %c0_15 = arith.constant 0 : index
    %24 = vector.load %arg5[%c0_14, %c0_15] : memref<128x1xf32, #tpu.memory_space<vmem>>, vector<128x1xf32>
    %25 = vector.broadcast %24 : vector<128x1xf32> to vector<128x128xf32>
    %26 = arith.mulf %23, %25 : vector<128x128xf32>
    %cst_16 = arith.constant dense<0.000000e+00> : vector<128xf32>
    %27 = vector.multi_reduction <add>, %26, %cst_16 [0] : vector<128x128xf32> to vector<128xf32>
    %28 = vector.shape_cast %27 : vector<128xf32> to vector<1x128xf32>
    %29 = vector.extract_strided_slice %0 {offsets = [3, 0], sizes = [1, 1], strides = [1, 1]} : vector<8x128xf32> to vector<1x1xf32>
    %30 = vector.broadcast %29 : vector<1x1xf32> to vector<1x128xf32>
    %31 = arith.addf %28, %30 : vector<1x128xf32>
    %32 = vector.shape_cast %31 : vector<1x128xf32> to vector<1x1x128xf32>
    %c0_17 = arith.constant 0 : index
    %c0_18 = arith.constant 0 : index
    %c0_19 = arith.constant 0 : index
    %33 = vector.load %arg7[%c0_17, %c0_18, %c0_19] : memref<1x1x128xf32, #tpu.memory_space<vmem>>, vector<1x1x128xf32>
    tpu.vector_store %arg7[%c0_17, %c0_18, %c0_19], %32 {strides = array<i32>} : memref<1x1x128xf32, #tpu.memory_space<vmem>>, vector<1x1x128xf32>,
    return
  }
  func.func @transform_0(%arg0: i32) -> (i32, i32) {
    %c0_i32 = arith.constant 0 : i32
    %c0_i32_0 = arith.constant 0 : i32
    return %arg0, %c0_i32 : i32, i32
  }
  func.func @transform_1(%arg0: i32) -> (i32, i32) {
    %c0_i32 = arith.constant 0 : i32
    %c0_i32_0 = arith.constant 0 : i32
    %c0_i32_1 = arith.constant 0 : i32
    return %c0_i32, %c0_i32_0 : i32, i32
  }
  func.func @transform_2(%arg0: i32) -> (i32, i32) {
    %c0_i32 = arith.constant 0 : i32
    %c0_i32_0 = arith.constant 0 : i32
    %c0_i32_1 = arith.constant 0 : i32
    return %c0_i32, %c0_i32_0 : i32, i32
  }
  func.func @transform_3(%arg0: i32) -> (i32, i32) {
    %c0_i32 = arith.constant 0 : i32
    %c0_i32_0 = arith.constant 0 : i32
    %c0_i32_1 = arith.constant 0 : i32
    return %c0_i32, %c0_i32_0 : i32, i32
  }
  func.func @transform_4(%arg0: i32) -> (i32, i32) {
    %c0_i32 = arith.constant 0 : i32
    %c0_i32_0 = arith.constant 0 : i32
    %c0_i32_1 = arith.constant 0 : i32
    return %c0_i32, %c0_i32_0 : i32, i32
  }
  func.func @transform_5(%arg0: i32) -> (i32, i32) {
    %c0_i32 = arith.constant 0 : i32
    %c0_i32_0 = arith.constant 0 : i32
    %c0_i32_1 = arith.constant 0 : i32
    return %c0_i32, %c0_i32_0 : i32, i32
  }
  func.func @transform_6(%arg0: i32) -> (i32, i32, i32) {
    %c0_i32 = arith.constant 0 : i32
    %c0_i32_0 = arith.constant 0 : i32
    %c0_i32_1 = arith.constant 0 : i32
    return %arg0, %c0_i32, %c0_i32_0 : i32, i32, i32
  }
}

</mosaic_0001>

<llo_original>
// kernel: tpu_custom_call.1
$region0: #{tpu_custom_call.1}
  #allocation0 [shape = 'u32[]', space=smem, size = 0x4, offset = 0x4, fixed_abs, tag = 'smem constant byte address 0x4 - core index']
  #allocation1 [shape = 'u32[144,128]{1,0:T(1,128)}', space=vmem, size = 0x12000, scoped, tag = 'internal scratch']
  %s0 = inlined_call_operand.vmem [shape: f32[128,4], index: 0, kind: input, shape index: {}]
  %s1 = inlined_call_operand.hbm [shape: f32[4,128], index: 1, kind: input, shape index: {}]
  %s2 = inlined_call_operand.vmem [shape: f32[128,128], index: 2, kind: input, shape index: {}]
  %s3 = inlined_call_operand.vmem [shape: f32[128,128], index: 3, kind: input, shape index: {}]
  %s4 = inlined_call_operand.vmem [shape: f32[128,1], index: 4, kind: input, shape index: {}]
  %s5 = inlined_call_operand.vmem [shape: f32[8,128], index: 5, kind: input, shape index: {}]
  %s6 = inlined_call_operand.hbm [shape: f32[1,1,128], index: 6, kind: output, shape index: {}]
  %s7 = sld [smem:[#allocation0]]
  $region38: #{tpu_custom_call.1} parent=0
    _
  %s9 = ssub.s32 1, %s7
  %s10 = scalar_select 0, %s9, %s7
  $region1: #{tpu_custom_call.1} parent=0
    #allocation2 [shape = 'u8[2048]{0}', space=vmem, size = 0x800, scoped, tag = 'input window, operand 1, single buffered']
    #allocation3 [shape = 's32[1]{0}', space=sflag, size = 0x4, scoped, tag = 'scoped memory for tpu_custom_call.1']
    #allocation4 [shape = 's32[1]{0}', space=sflag, size = 0x4, scoped, tag = 'scoped memory for tpu_custom_call.1']
    #allocation5 [shape = 'u8[512]{0}', space=vmem, size = 0x400, scoped, tag = 'output window, operand 0, single buffered']
    %11 = vsyncpa [#allocation3], 0
    %12 = vsyncpa [#allocation4], 0
    // Predicated region
    $region2: #{tpu_custom_call.1} parent=1 // pred_check
      _
    $region3: #{tpu_custom_call.1} parent=1 // pred_check_branch
      %14 = sbr.rel (0) target = $region5
    $region4: #{tpu_custom_call.1} parent=1 // pred_region
      _
    $region5: #{tpu_custom_call.1} parent=1 // pred_fallthru
      _
    // Predicated region
    $region6: #{tpu_custom_call.1} parent=1 // pred_check
      _
    $region7: #{tpu_custom_call.1} parent=1 // pred_check_branch
      %16 = sbr.rel (0) target = $region9
    $region8: #{tpu_custom_call.1} parent=1 // pred_region
      %s18 = ssub.s32 64, 64
      %19 = vsyncadd [#allocation3], %s18
      %s21 = sshll.u32 [#allocation2], 4
      %s22 = int_to_ptr.vmem [resolvable:$true] %s21
      %24 = dma.hbm_to_vmem [thread:$0]  %s1, 64, %s22, [#allocation3]
    $region9: #{tpu_custom_call.1} parent=1 // pred_fallthru
      _
    // Predicated region
    $region10: #{tpu_custom_call.1} parent=1 // pred_check
      _
    $region11: #{tpu_custom_call.1} parent=1 // pred_check_branch
      %26 = sbr.rel (0) target = $region13
    $region12: #{tpu_custom_call.1} parent=1 // pred_region
      _
    $region13: #{tpu_custom_call.1} parent=1 // pred_fallthru
      _
    // Predicated region
    $region14: #{tpu_custom_call.1} parent=1 // pred_check
      _
    $region15: #{tpu_custom_call.1} parent=1 // pred_check_branch
      %28 = sbr.rel (0) target = $region17
    $region16: #{tpu_custom_call.1} parent=1 // pred_region
      _
    $region17: #{tpu_custom_call.1} parent=1 // pred_fallthru
      _
    // Predicated region
    $region18: #{tpu_custom_call.1} parent=1 // pred_check
      _
    $region19: #{tpu_custom_call.1} parent=1 // pred_check_branch
      %30 = sbr.rel (0) target = $region21
    $region20: #{tpu_custom_call.1} parent=1 // pred_region
      _
    $region21: #{tpu_custom_call.1} parent=1 // pred_fallthru
      _
    // Predicated region
    $region22: #{tpu_custom_call.1} parent=1 // pred_check
      _
    $region23: #{tpu_custom_call.1} parent=1 // pred_check_branch
      %32 = sbr.rel (0) target = $region25
    $region24: #{tpu_custom_call.1} parent=1 // pred_region
      _
    $region25: #{tpu_custom_call.1} parent=1 // pred_fallthru
      _
    // Predicated region
    $region26: #{tpu_custom_call.1} parent=1 // pred_check
      _
    $region27: #{tpu_custom_call.1} parent=1 // pred_check_branch
      %34 = sbr.rel (0) target = $region29
    $region28: #{tpu_custom_call.1} parent=1 // pred_region
      %35 = dma.done [#allocation3], 64
    $region29: #{tpu_custom_call.1} parent=1 // pred_fallthru
      _
    %v36 = vld [vmem:[%s5] sm:$0xff]
    %v37 = vld [vmem:[%s0] sm:$0xff]
    %v38 = vld [vmem:[%s0 + $0x8] sm:$0xff]
    %v39 = vld [vmem:[%s0 + $0x10] sm:$0xff]
    %v40 = vld [vmem:[%s0 + $0x18] sm:$0xff]
    %v41 = vld [vmem:[%s0 + $0x20] sm:$0xff]
    %v42 = vld [vmem:[%s0 + $0x28] sm:$0xff]
    %v43 = vld [vmem:[%s0 + $0x30] sm:$0xff]
    %v44 = vld [vmem:[%s0 + $0x38] sm:$0xff]
    %v45 = vld [vmem:[%s0 + $0x40] sm:$0xff]
    %v46 = vld [vmem:[%s0 + $0x48] sm:$0xff]
    %v47 = vld [vmem:[%s0 + $0x50] sm:$0xff]
    %v48 = vld [vmem:[%s0 + $0x58] sm:$0xff]
    %v49 = vld [vmem:[%s0 + $0x60] sm:$0xff]
    %v50 = vld [vmem:[%s0 + $0x68] sm:$0xff]
    %v51 = vld [vmem:[%s0 + $0x70] sm:$0xff]
    %v52 = vld [vmem:[%s0 + $0x78] sm:$0xff]
    %v53 = vld [vmem:[#allocation2] sm:$0xf]
    %v54 = vlaneseq
    %v55 = vshrl.u32 %v54, 7
    %v56 = vsub.s32 0, %v55
    %v57 = vrot.slane %v36, %v56
    %vm58 = vcmask 31744
    %v60 = vsel %vm58, %v37, 0
    %v63 = vsel %vm58, %v38, 0
    %v66 = vsel %vm58, %v39, 0
    %v69 = vsel %vm58, %v40, 0
    %v72 = vsel %vm58, %v41, 0
    %v75 = vsel %vm58, %v42, 0
    %v78 = vsel %vm58, %v43, 0
    %v81 = vsel %vm58, %v44, 0
    %v84 = vsel %vm58, %v45, 0
    %v87 = vsel %vm58, %v46, 0
    %v90 = vsel %vm58, %v47, 0
    %v93 = vsel %vm58, %v48, 0
    %v96 = vsel %vm58, %v49, 0
    %v99 = vsel %vm58, %v50, 0
    %v102 = vsel %vm58, %v51, 0
    %v105 = vsel %vm58, %v52, 0
    %vm107 = vcmask 1043456
    %v109 = vsel %vm107, %v53, 0
    %111 = vmatprep.subr.mxu0 0.0
    %112 = vmatpush1.msra.mxu0 %v109
    %113 = vmatprep.subr.mxu0 0.0
    %114 = vmatpush1.msra.mxu0 0.0
    %115 = vmatprep.subr.mxu0 0.0
    %116 = vmatpush1.msra.mxu0 0.0
    %117 = vmatprep.subr.mxu0 0.0
    %118 = vmatpush1.msra.mxu0 0.0
    %119 = vmatprep.subr.mxu0 0.0
    %120 = vmatpush1.msra.mxu0 0.0
    %121 = vmatprep.subr.mxu0 0.0
    %122 = vmatpush1.msra.mxu0 0.0
    %123 = vmatprep.subr.mxu0 0.0
    %124 = vmatpush1.msra.mxu0 0.0
    %125 = vmatprep.subr.mxu0 0.0
    %126 = vmatpush1.msra.mxu0 0.0
    %127 = vmatprep.subr.mxu0 0.0
    %128 = vmatpush1.msra.mxu0 0.0
    %129 = vmatprep.subr.mxu0 0.0
    %130 = vmatpush1.msra.mxu0 0.0
    %131 = vmatprep.subr.mxu0 0.0
    %132 = vmatpush1.msra.mxu0 0.0
    %133 = vmatprep.subr.mxu0 0.0
    %134 = vmatpush1.msra.mxu0 0.0
    %135 = vmatprep.subr.mxu0 0.0
    %136 = vmatpush1.msra.mxu0 0.0
    %137 = vmatprep.subr.mxu0 0.0
    %138 = vmatpush1.msra.mxu0 0.0
    %139 = vmatprep.subr.mxu0 0.0
    %140 = vmatpush1.msra.mxu0 0.0
    %141 = vmatprep.subr.mxu0 0.0
    %142 = vmatpush1.msra.mxu0 0.0
    %143 = vmatprep.subr.mxu0 0.0
    %144 = vmatpush1.msra.mxu0 0.0
    %145 = vmatprep.subr.mxu0 0.0
    %146 = vmatpush1.msra.mxu0 0.0
    %147 = vmatprep.subr.mxu0 0.0
    %148 = vmatpush1.msra.mxu0 0.0
    %149 = vmatprep.subr.mxu0 0.0
    %150 = vmatpush1.msra.mxu0 0.0
    %151 = vmatprep.subr.mxu0 0.0
    %152 = vmatpush1.msra.mxu0 0.0
    %153 = vmatprep.subr.mxu0 0.0
    %154 = vmatpush1.msra.mxu0 0.0
    %155 = vmatprep.subr.mxu0 0.0
    %156 = vmatpush1.msra.mxu0 0.0
    %157 = vmatprep.subr.mxu0 0.0
    %158 = vmatpush1.msra.mxu0 0.0
    %159 = vmatprep.subr.mxu0 0.0
    %160 = vmatpush1.msra.mxu0 0.0
    %161 = vmatprep.subr.mxu0 0.0
    %162 = vmatpush1.msra.mxu0 0.0
    %163 = vmatprep.subr.mxu0 0.0
    %164 = vmatpush1.msra.mxu0 0.0
    %165 = vmatprep.subr.mxu0 0.0
    %166 = vmatpush1.msra.mxu0 0.0
    %167 = vmatprep.subr.mxu0 0.0
    %168 = vmatpush1.msra.mxu0 0.0
    %169 = vmatprep.subr.mxu0 0.0
    %170 = vmatpush1.msra.mxu0 0.0
    %171 = vmatprep.subr.mxu0 0.0
    %172 = vmatpush1.msra.mxu0 0.0
    %173 = vmatprep.subr.mxu0 0.0
    %174 = vmatpush1.msra.mxu0 0.0
    %175 = vmatprep.mubr.f32.mxu0 0.0
    %176 = vmatmul.mubr.f32.gmra.mrb[0].mxu0 %v60
    %v177 = vpop.f32.mrb[0].mxu0
    %v178 = vadd.f32 %v57, %v177
    %v179 = vpop.f32.mrb[0].mxu0
    %180 = vmatprep.mubr.f32.mxu0 0.0
    %181 = vmatmul.mubr.f32.gmra.mrb[0].mxu0 %v63
    %v182 = vpop.f32.mrb[0].mxu0
    %v183 = vadd.f32 %v57, %v182
    %v184 = vpop.f32.mrb[0].mxu0
    %185 = vmatprep.mubr.f32.mxu0 0.0
    %186 = vmatmul.mubr.f32.gmra.mrb[0].mxu0 %v66
    %v187 = vpop.f32.mrb[0].mxu0
    %v188 = vadd.f32 %v57, %v187
    %v189 = vpop.f32.mrb[0].mxu0
    %190 = vmatprep.mubr.f32.mxu0 0.0
    %191 = vmatmul.mubr.f32.gmra.mrb[0].mxu0 %v69
    %v192 = vpop.f32.mrb[0].mxu0
    %v193 = vadd.f32 %v57, %v192
    %v194 = vpop.f32.mrb[0].mxu0
    %195 = vmatprep.mubr.f32.mxu0 0.0
    %196 = vmatmul.mubr.f32.gmra.mrb[0].mxu0 %v72
    %v197 = vpop.f32.mrb[0].mxu0
    %v198 = vadd.f32 %v57, %v197
    %v199 = vpop.f32.mrb[0].mxu0
    %200 = vmatprep.mubr.f32.mxu0 0.0
    %201 = vmatmul.mubr.f32.gmra.mrb[0].mxu0 %v75
    %v202 = vpop.f32.mrb[0].mxu0
    %v203 = vadd.f32 %v57, %v202
    %v204 = vpop.f32.mrb[0].mxu0
    %205 = vmatprep.mubr.f32.mxu0 0.0
    %206 = vmatmul.mubr.f32.gmra.mrb[0].mxu0 %v78
    %v207 = vpop.f32.mrb[0].mxu0
    %v208 = vadd.f32 %v57, %v207
    %v209 = vpop.f32.mrb[0].mxu0
    %210 = vmatprep.mubr.f32.mxu0 0.0
    %211 = vmatmul.mubr.f32.gmra.mrb[0].mxu0 %v81
    %v212 = vpop.f32.mrb[0].mxu0
    %v213 = vadd.f32 %v57, %v212
    %v214 = vpop.f32.mrb[0].mxu0
    %215 = vmatprep.mubr.f32.mxu0 0.0
    %216 = vmatmul.mubr.f32.gmra.mrb[0].mxu0 %v84
    %v217 = vpop.f32.mrb[0].mxu0
    %v218 = vadd.f32 %v57, %v217
    %v219 = vpop.f32.mrb[0].mxu0
    %220 = vmatprep.mubr.f32.mxu0 0.0
    %221 = vmatmul.mubr.f32.gmra.mrb[0].mxu0 %v87
    %v222 = vpop.f32.mrb[0].mxu0
    %v223 = vadd.f32 %v57, %v222
    %v224 = vpop.f32.mrb[0].mxu0
    %225 = vmatprep.mubr.f32.mxu0 0.0
    %226 = vmatmul.mubr.f32.gmra.mrb[0].mxu0 %v90
    %v227 = vpop.f32.mrb[0].mxu0
    %v228 = vadd.f32 %v57, %v227
    %v229 = vpop.f32.mrb[0].mxu0
    %230 = vmatprep.mubr.f32.mxu0 0.0
    %231 = vmatmul.mubr.f32.gmra.mrb[0].mxu0 %v93
    %v232 = vpop.f32.mrb[0].mxu0
    %v233 = vadd.f32 %v57, %v232
    %v234 = vpop.f32.mrb[0].mxu0
    %235 = vmatprep.mubr.f32.mxu0 0.0
    %236 = vmatmul.mubr.f32.gmra.mrb[0].mxu0 %v96
    %v237 = vpop.f32.mrb[0].mxu0
    %v238 = vadd.f32 %v57, %v237
    %v239 = vpop.f32.mrb[0].mxu0
    %240 = vmatprep.mubr.f32.mxu0 0.0
    %241 = vmatmul.mubr.f32.gmra.mrb[0].mxu0 %v99
    %v242 = vpop.f32.mrb[0].mxu0
    %v243 = vadd.f32 %v57, %v242
    %v244 = vpop.f32.mrb[0].mxu0
    %245 = vmatprep.mubr.f32.mxu0 0.0
    %246 = vmatmul.mubr.f32.gmra.mrb[0].mxu0 %v102
    %v247 = vpop.f32.mrb[0].mxu0
    %v248 = vadd.f32 %v57, %v247
    %v249 = vpop.f32.mrb[0].mxu0
    %250 = vmatprep.mubr.f32.mxu0 0.0
    %251 = vmatmul.mubr.f32.gmra.mrb[0].mxu0 %v105
    %v252 = vpop.f32.mrb[0].mxu0
    %v253 = vadd.f32 %v57, %v252
    %v254 = vpop.f32.mrb[0].mxu0
    %255 = vdwg.mxu0
    %v256 = vmax.f32 %v178, 0.0
    %v257 = vmax.f32 %v183, 0.0
    %v258 = vmax.f32 %v188, 0.0
    %v259 = vmax.f32 %v193, 0.0
    %v260 = vmax.f32 %v198, 0.0
    %v261 = vmax.f32 %v203, 0.0
    %v262 = vmax.f32 %v208, 0.0
    %v263 = vmax.f32 %v213, 0.0
    %v264 = vmax.f32 %v218, 0.0
    %v265 = vmax.f32 %v223, 0.0
    %v266 = vmax.f32 %v228, 0.0
    %v267 = vmax.f32 %v233, 0.0
    %v268 = vmax.f32 %v238, 0.0
    %v269 = vmax.f32 %v243, 0.0
    %v270 = vmax.f32 %v248, 0.0
    %v271 = vmax.f32 %v253, 0.0
    %v272 = vld [vmem:[%s2] sm:$0xff]
    %v273 = vld [vmem:[%s2 + $0x8] sm:$0xff]
    %v274 = vld [vmem:[%s2 + $0x10] sm:$0xff]
    %v275 = vld [vmem:[%s2 + $0x18] sm:$0xff]
    %v276 = vld [vmem:[%s2 + $0x20] sm:$0xff]
    %v277 = vld [vmem:[%s2 + $0x28] sm:$0xff]
    %v278 = vld [vmem:[%s2 + $0x30] sm:$0xff]
    %v279 = vld [vmem:[%s2 + $0x38] sm:$0xff]
    %v280 = vld [vmem:[%s2 + $0x40] sm:$0xff]
    %v281 = vld [vmem:[%s2 + $0x48] sm:$0xff]
    %v282 = vld [vmem:[%s2 + $0x50] sm:$0xff]
    %v283 = vld [vmem:[%s2 + $0x58] sm:$0xff]
    %v284 = vld [vmem:[%s2 + $0x60] sm:$0xff]
    %v285 = vld [vmem:[%s2 + $0x68] sm:$0xff]
    %v286 = vld [vmem:[%s2 + $0x70] sm:$0xff]
    %v287 = vld [vmem:[%s2 + $0x78] sm:$0xff]
    %v288 = vlaneseq
    %v289 = vshrl.u32 %v288, 7
    %v290 = vsub.s32 1, %v289
    %v291 = vrot.slane %v36, %v290
    %292 = vmatprep.subr.mxu0 0.0
    %293 = vmatpush1.msra.mxu0 %v272
    %294 = vmatprep.subr.mxu0 0.0
    %295 = vmatpush1.msra.mxu0 %v273
    %296 = vmatprep.subr.mxu0 0.0
    %297 = vmatpush1.msra.mxu0 %v274
    %298 = vmatprep.subr.mxu0 0.0
    %299 = vmatpush1.msra.mxu0 %v275
    %300 = vmatprep.subr.mxu0 0.0
    %301 = vmatpush1.msra.mxu0 %v276
    %302 = vmatprep.subr.mxu0 0.0
    %303 = vmatpush1.msra.mxu0 %v277
    %304 = vmatprep.subr.mxu0 0.0
    %305 = vmatpush1.msra.mxu0 %v278
    %306 = vmatprep.subr.mxu0 0.0
    %307 = vmatpush1.msra.mxu0 %v279
    %308 = vmatprep.subr.mxu0 0.0
    %309 = vmatpush1.msra.mxu0 %v280
    %310 = vmatprep.subr.mxu0 0.0
    %311 = vmatpush1.msra.mxu0 %v281
    %312 = vmatprep.subr.mxu0 0.0
    %313 = vmatpush1.msra.mxu0 %v282
    %314 = vmatprep.subr.mxu0 0.0
    %315 = vmatpush1.msra.mxu0 %v283
    %316 = vmatprep.subr.mxu0 0.0
    %317 = vmatpush1.msra.mxu0 %v284
    %318 = vmatprep.subr.mxu0 0.0
    %319 = vmatpush1.msra.mxu0 %v285
    %320 = vmatprep.subr.mxu0 0.0
    %321 = vmatpush1.msra.mxu0 %v286
    %322 = vmatprep.subr.mxu0 0.0
    %323 = vmatpush1.msra.mxu0 %v287
    %324 = vmatprep.subr.mxu0 0.0
    %325 = vmatpush1.msra.mxu0 0.0
    %326 = vmatprep.subr.mxu0 0.0
    %327 = vmatpush1.msra.mxu0 0.0
    %328 = vmatprep.subr.mxu0 0.0
    %329 = vmatpush1.msra.mxu0 0.0
    %330 = vmatprep.subr.mxu0 0.0
    %331 = vmatpush1.msra.mxu0 0.0
    %332 = vmatprep.subr.mxu0 0.0
    %333 = vmatpush1.msra.mxu0 0.0
    %334 = vmatprep.subr.mxu0 0.0
    %335 = vmatpush1.msra.mxu0 0.0
    %336 = vmatprep.subr.mxu0 0.0
    %337 = vmatpush1.msra.mxu0 0.0
    %338 = vmatprep.subr.mxu0 0.0
    %339 = vmatpush1.msra.mxu0 0.0
    %340 = vmatprep.subr.mxu0 0.0
    %341 = vmatpush1.msra.mxu0 0.0
    %342 = vmatprep.subr.mxu0 0.0
    %343 = vmatpush1.msra.mxu0 0.0
    %344 = vmatprep.subr.mxu0 0.0
    %345 = vmatpush1.msra.mxu0 0.0
    %346 = vmatprep.subr.mxu0 0.0
    %347 = vmatpush1.msra.mxu0 0.0
    %348 = vmatprep.subr.mxu0 0.0
    %349 = vmatpush1.msra.mxu0 0.0
    %350 = vmatprep.subr.mxu0 0.0
    %351 = vmatpush1.msra.mxu0 0.0
    %352 = vmatprep.subr.mxu0 0.0
    %353 = vmatpush1.msra.mxu0 0.0
    %354 = vmatprep.subr.mxu0 0.0
    %355 = vmatpush1.msra.mxu0 0.0
    %356 = vmatprep.mubr.f32.mxu0 0.0
    %357 = vmatmul.mubr.f32.gmra.mrb[0].mxu0 %v256
    %v358 = vpop.f32.mrb[0].mxu0
    %v359 = vadd.f32 %v291, %v358
    %v360 = vpop.f32.mrb[0].mxu0
    %361 = vmatprep.mubr.f32.mxu0 0.0
    %362 = vmatmul.mubr.f32.gmra.mrb[0].mxu0 %v257
    %v363 = vpop.f32.mrb[0].mxu0
    %v364 = vadd.f32 %v291, %v363
    %v365 = vpop.f32.mrb[0].mxu0
    %366 = vmatprep.mubr.f32.mxu0 0.0
    %367 = vmatmul.mubr.f32.gmra.mrb[0].mxu0 %v258
    %v368 = vpop.f32.mrb[0].mxu0
    %v369 = vadd.f32 %v291, %v368
    %v370 = vpop.f32.mrb[0].mxu0
    %371 = vmatprep.mubr.f32.mxu0 0.0
    %372 = vmatmul.mubr.f32.gmra.mrb[0].mxu0 %v259
    %v373 = vpop.f32.mrb[0].mxu0
    %v374 = vadd.f32 %v291, %v373
    %v375 = vpop.f32.mrb[0].mxu0
    %376 = vmatprep.mubr.f32.mxu0 0.0
    %377 = vmatmul.mubr.f32.gmra.mrb[0].mxu0 %v260
    %v378 = vpop.f32.mrb[0].mxu0
    %v379 = vadd.f32 %v291, %v378
    %v380 = vpop.f32.mrb[0].mxu0
    %381 = vmatprep.mubr.f32.mxu0 0.0
    %382 = vmatmul.mubr.f32.gmra.mrb[0].mxu0 %v261
    %v383 = vpop.f32.mrb[0].mxu0
    %v384 = vadd.f32 %v291, %v383
    %v385 = vpop.f32.mrb[0].mxu0
    %386 = vmatprep.mubr.f32.mxu0 0.0
    %387 = vmatmul.mubr.f32.gmra.mrb[0].mxu0 %v262
    %v388 = vpop.f32.mrb[0].mxu0
    %v389 = vadd.f32 %v291, %v388
    %v390 = vpop.f32.mrb[0].mxu0
    %391 = vmatprep.mubr.f32.mxu0 0.0
    %392 = vmatmul.mubr.f32.gmra.mrb[0].mxu0 %v263
    %v393 = vpop.f32.mrb[0].mxu0
    %v394 = vadd.f32 %v291, %v393
    %v395 = vpop.f32.mrb[0].mxu0
    %396 = vmatprep.mubr.f32.mxu0 0.0
    %397 = vmatmul.mubr.f32.gmra.mrb[0].mxu0 %v264
    %v398 = vpop.f32.mrb[0].mxu0
    %v399 = vadd.f32 %v291, %v398
    %v400 = vpop.f32.mrb[0].mxu0
    %401 = vmatprep.mubr.f32.mxu0 0.0
    %402 = vmatmul.mubr.f32.gmra.mrb[0].mxu0 %v265
    %v403 = vpop.f32.mrb[0].mxu0
    %v404 = vadd.f32 %v291, %v403
    %v405 = vpop.f32.mrb[0].mxu0
    %406 = vmatprep.mubr.f32.mxu0 0.0
    %407 = vmatmul.mubr.f32.gmra.mrb[0].mxu0 %v266
    %v408 = vpop.f32.mrb[0].mxu0
    %v409 = vadd.f32 %v291, %v408
    %v410 = vpop.f32.mrb[0].mxu0
    %411 = vmatprep.mubr.f32.mxu0 0.0
    %412 = vmatmul.mubr.f32.gmra.mrb[0].mxu0 %v267
    %v413 = vpop.f32.mrb[0].mxu0
    %v414 = vadd.f32 %v291, %v413
    %v415 = vpop.f32.mrb[0].mxu0
    %416 = vmatprep.mubr.f32.mxu0 0.0
    %417 = vmatmul.mubr.f32.gmra.mrb[0].mxu0 %v268
    %v418 = vpop.f32.mrb[0].mxu0
    %v419 = vadd.f32 %v291, %v418
    %v420 = vpop.f32.mrb[0].mxu0
    %421 = vmatprep.mubr.f32.mxu0 0.0
    %422 = vmatmul.mubr.f32.gmra.mrb[0].mxu0 %v269
    %v423 = vpop.f32.mrb[0].mxu0
    %v424 = vadd.f32 %v291, %v423
    %v425 = vpop.f32.mrb[0].mxu0
    %426 = vmatprep.mubr.f32.mxu0 0.0
    %427 = vmatmul.mubr.f32.gmra.mrb[0].mxu0 %v270
    %v428 = vpop.f32.mrb[0].mxu0
    %v429 = vadd.f32 %v291, %v428
    %v430 = vpop.f32.mrb[0].mxu0
    %431 = vmatprep.mubr.f32.mxu0 0.0
    %432 = vmatmul.mubr.f32.gmra.mrb[0].mxu0 %v271
    %v433 = vpop.f32.mrb[0].mxu0
    %v434 = vadd.f32 %v291, %v433
    %v435 = vpop.f32.mrb[0].mxu0
    %436 = vdwg.mxu0
    %v437 = vmax.f32 %v359, 0.0
    %v438 = vmax.f32 %v364, 0.0
    %v439 = vmax.f32 %v369, 0.0
    %v440 = vmax.f32 %v374, 0.0
    %v441 = vmax.f32 %v379, 0.0
    %v442 = vmax.f32 %v384, 0.0
    %v443 = vmax.f32 %v389, 0.0
    %v444 = vmax.f32 %v394, 0.0
    %v445 = vmax.f32 %v399, 0.0
    %v446 = vmax.f32 %v404, 0.0
    %v447 = vmax.f32 %v409, 0.0
    %v448 = vmax.f32 %v414, 0.0
    %v449 = vmax.f32 %v419, 0.0
    %v450 = vmax.f32 %v424, 0.0
    %v451 = vmax.f32 %v429, 0.0
    %v452 = vmax.f32 %v434, 0.0
    %v453 = vld [vmem:[%s3] sm:$0xff]
    %v454 = vld [vmem:[%s3 + $0x8] sm:$0xff]
    %v455 = vld [vmem:[%s3 + $0x10] sm:$0xff]
    %v456 = vld [vmem:[%s3 + $0x18] sm:$0xff]
    %v457 = vld [vmem:[%s3 + $0x20] sm:$0xff]
    %v458 = vld [vmem:[%s3 + $0x28] sm:$0xff]
    %v459 = vld [vmem:[%s3 + $0x30] sm:$0xff]
    %v460 = vld [vmem:[%s3 + $0x38] sm:$0xff]
    %v461 = vld [vmem:[%s3 + $0x40] sm:$0xff]
    %v462 = vld [vmem:[%s3 + $0x48] sm:$0xff]
    %v463 = vld [vmem:[%s3 + $0x50] sm:$0xff]
    %v464 = vld [vmem:[%s3 + $0x58] sm:$0xff]
    %v465 = vld [vmem:[%s3 + $0x60] sm:$0xff]
    %v466 = vld [vmem:[%s3 + $0x68] sm:$0xff]
    %v467 = vld [vmem:[%s3 + $0x70] sm:$0xff]
    %v468 = vld [vmem:[%s3 + $0x78] sm:$0xff]
    %v469 = vlaneseq
    %v470 = vshrl.u32 %v469, 7
    %v471 = vsub.s32 2, %v470
    %v472 = vrot.slane %v36, %v471
    %473 = vmatprep.subr.mxu0 0.0
    %474 = vmatpush1.msra.mxu0 %v453
    %475 = vmatprep.subr.mxu0 0.0
    %476 = vmatpush1.msra.mxu0 %v454
    %477 = vmatprep.subr.mxu0 0.0
    %478 = vmatpush1.msra.mxu0 %v455
    %479 = vmatprep.subr.mxu0 0.0
    %480 = vmatpush1.msra.mxu0 %v456
    %481 = vmatprep.subr.mxu0 0.0
    %482 = vmatpush1.msra.mxu0 %v457
    %483 = vmatprep.subr.mxu0 0.0
    %484 = vmatpush1.msra.mxu0 %v458
    %485 = vmatprep.subr.mxu0 0.0
    %486 = vmatpush1.msra.mxu0 %v459
    %487 = vmatprep.subr.mxu0 0.0
    %488 = vmatpush1.msra.mxu0 %v460
    %489 = vmatprep.subr.mxu0 0.0
    %490 = vmatpush1.msra.mxu0 %v461
    %491 = vmatprep.subr.mxu0 0.0
    %492 = vmatpush1.msra.mxu0 %v462
    %493 = vmatprep.subr.mxu0 0.0
    %494 = vmatpush1.msra.mxu0 %v463
    %495 = vmatprep.subr.mxu0 0.0
    %496 = vmatpush1.msra.mxu0 %v464
    %497 = vmatprep.subr.mxu0 0.0
    %498 = vmatpush1.msra.mxu0 %v465
    %499 = vmatprep.subr.mxu0 0.0
    %500 = vmatpush1.msra.mxu0 %v466
    %501 = vmatprep.subr.mxu0 0.0
    %502 = vmatpush1.msra.mxu0 %v467
    %503 = vmatprep.subr.mxu0 0.0
    %504 = vmatpush1.msra.mxu0 %v468
    %505 = vmatprep.subr.mxu0 0.0
    %506 = vmatpush1.msra.mxu0 0.0
    %507 = vmatprep.subr.mxu0 0.0
    %508 = vmatpush1.msra.mxu0 0.0
    %509 = vmatprep.subr.mxu0 0.0
    %510 = vmatpush1.msra.mxu0 0.0
    %511 = vmatprep.subr.mxu0 0.0
    %512 = vmatpush1.msra.mxu0 0.0
    %513 = vmatprep.subr.mxu0 0.0
    %514 = vmatpush1.msra.mxu0 0.0
    %515 = vmatprep.subr.mxu0 0.0
    %516 = vmatpush1.msra.mxu0 0.0
    %517 = vmatprep.subr.mxu0 0.0
    %518 = vmatpush1.msra.mxu0 0.0
    %519 = vmatprep.subr.mxu0 0.0
    %520 = vmatpush1.msra.mxu0 0.0
    %521 = vmatprep.subr.mxu0 0.0
    %522 = vmatpush1.msra.mxu0 0.0
    %523 = vmatprep.subr.mxu0 0.0
    %524 = vmatpush1.msra.mxu0 0.0
    %525 = vmatprep.subr.mxu0 0.0
    %526 = vmatpush1.msra.mxu0 0.0
    %527 = vmatprep.subr.mxu0 0.0
    %528 = vmatpush1.msra.mxu0 0.0
    %529 = vmatprep.subr.mxu0 0.0
    %530 = vmatpush1.msra.mxu0 0.0
    %531 = vmatprep.subr.mxu0 0.0
    %532 = vmatpush1.msra.mxu0 0.0
    %533 = vmatprep.subr.mxu0 0.0
    %534 = vmatpush1.msra.mxu0 0.0
    %535 = vmatprep.subr.mxu0 0.0
    %536 = vmatpush1.msra.mxu0 0.0
    %537 = vmatprep.mubr.f32.mxu0 0.0
    %538 = vmatmul.mubr.f32.gmra.mrb[0].mxu0 %v437
    %v539 = vpop.f32.mrb[0].mxu0
    %v540 = vadd.f32 %v472, %v539
    %v541 = vpop.f32.mrb[0].mxu0
    %542 = vmatprep.mubr.f32.mxu0 0.0
    %543 = vmatmul.mubr.f32.gmra.mrb[0].mxu0 %v438
    %v544 = vpop.f32.mrb[0].mxu0
    %v545 = vadd.f32 %v472, %v544
    %v546 = vpop.f32.mrb[0].mxu0
    %547 = vmatprep.mubr.f32.mxu0 0.0
    %548 = vmatmul.mubr.f32.gmra.mrb[0].mxu0 %v439
    %v549 = vpop.f32.mrb[0].mxu0
    %v550 = vadd.f32 %v472, %v549
    %v551 = vpop.f32.mrb[0].mxu0
    %552 = vmatprep.mubr.f32.mxu0 0.0
    %553 = vmatmul.mubr.f32.gmra.mrb[0].mxu0 %v440
    %v554 = vpop.f32.mrb[0].mxu0
    %v555 = vadd.f32 %v472, %v554
    %v556 = vpop.f32.mrb[0].mxu0
    %557 = vmatprep.mubr.f32.mxu0 0.0
    %558 = vmatmul.mubr.f32.gmra.mrb[0].mxu0 %v441
    %v559 = vpop.f32.mrb[0].mxu0
    %v560 = vadd.f32 %v472, %v559
    %v561 = vpop.f32.mrb[0].mxu0
    %562 = vmatprep.mubr.f32.mxu0 0.0
    %563 = vmatmul.mubr.f32.gmra.mrb[0].mxu0 %v442
    %v564 = vpop.f32.mrb[0].mxu0
    %v565 = vadd.f32 %v472, %v564
    %v566 = vpop.f32.mrb[0].mxu0
    %567 = vmatprep.mubr.f32.mxu0 0.0
    %568 = vmatmul.mubr.f32.gmra.mrb[0].mxu0 %v443
    %v569 = vpop.f32.mrb[0].mxu0
    %v570 = vadd.f32 %v472, %v569
    %v571 = vpop.f32.mrb[0].mxu0
    %572 = vmatprep.mubr.f32.mxu0 0.0
    %573 = vmatmul.mubr.f32.gmra.mrb[0].mxu0 %v444
    %v574 = vpop.f32.mrb[0].mxu0
    %v575 = vadd.f32 %v472, %v574
    %v576 = vpop.f32.mrb[0].mxu0
    %577 = vmatprep.mubr.f32.mxu0 0.0
    %578 = vmatmul.mubr.f32.gmra.mrb[0].mxu0 %v445
    %v579 = vpop.f32.mrb[0].mxu0
    %v580 = vadd.f32 %v472, %v579
    %v581 = vpop.f32.mrb[0].mxu0
    %582 = vmatprep.mubr.f32.mxu0 0.0
    %583 = vmatmul.mubr.f32.gmra.mrb[0].mxu0 %v446
    %v584 = vpop.f32.mrb[0].mxu0
    %v585 = vadd.f32 %v472, %v584
    %v586 = vpop.f32.mrb[0].mxu0
    %587 = vmatprep.mubr.f32.mxu0 0.0
    %588 = vmatmul.mubr.f32.gmra.mrb[0].mxu0 %v447
    %v589 = vpop.f32.mrb[0].mxu0
    %v590 = vadd.f32 %v472, %v589
    %v591 = vpop.f32.mrb[0].mxu0
    %592 = vmatprep.mubr.f32.mxu0 0.0
    %593 = vmatmul.mubr.f32.gmra.mrb[0].mxu0 %v448
    %v594 = vpop.f32.mrb[0].mxu0
    %v595 = vadd.f32 %v472, %v594
    %v596 = vpop.f32.mrb[0].mxu0
    %597 = vmatprep.mubr.f32.mxu0 0.0
    %598 = vmatmul.mubr.f32.gmra.mrb[0].mxu0 %v449
    %v599 = vpop.f32.mrb[0].mxu0
    %v600 = vadd.f32 %v472, %v599
    %v601 = vpop.f32.mrb[0].mxu0
    %602 = vmatprep.mubr.f32.mxu0 0.0
    %603 = vmatmul.mubr.f32.gmra.mrb[0].mxu0 %v450
    %v604 = vpop.f32.mrb[0].mxu0
    %v605 = vadd.f32 %v472, %v604
    %v606 = vpop.f32.mrb[0].mxu0
    %607 = vmatprep.mubr.f32.mxu0 0.0
    %608 = vmatmul.mubr.f32.gmra.mrb[0].mxu0 %v451
    %v609 = vpop.f32.mrb[0].mxu0
    %v610 = vadd.f32 %v472, %v609
    %v611 = vpop.f32.mrb[0].mxu0
    %612 = vmatprep.mubr.f32.mxu0 0.0
    %613 = vmatmul.mubr.f32.gmra.mrb[0].mxu0 %v452
    %v614 = vpop.f32.mrb[0].mxu0
    %v615 = vadd.f32 %v472, %v614
    %v616 = vpop.f32.mrb[0].mxu0
    %617 = vdwg.mxu0
    %v618 = vmax.f32 %v540, 0.0
    %v619 = vmax.f32 %v545, 0.0
    %v620 = vmax.f32 %v550, 0.0
    %v621 = vmax.f32 %v555, 0.0
    %v622 = vmax.f32 %v560, 0.0
    %v623 = vmax.f32 %v565, 0.0
    %v624 = vmax.f32 %v570, 0.0
    %v625 = vmax.f32 %v575, 0.0
    %v626 = vmax.f32 %v580, 0.0
    %v627 = vmax.f32 %v585, 0.0
    %v628 = vmax.f32 %v590, 0.0
    %v629 = vmax.f32 %v595, 0.0
    %v630 = vmax.f32 %v600, 0.0
    %v631 = vmax.f32 %v605, 0.0
    %v632 = vmax.f32 %v610, 0.0
    %v633 = vmax.f32 %v615, 0.0
    %634 = vxpose.xlu0.b32.start [1/16] %v618, 128
    %635 = vxpose.xlu0.b32.cont [2/16] %v619, 128
    %636 = vxpose.xlu0.b32.cont [3/16] %v620, 128
    %637 = vxpose.xlu0.b32.cont [4/16] %v621, 128
    %638 = vxpose.xlu0.b32.cont [5/16] %v622, 128
    %639 = vxpose.xlu0.b32.cont [6/16] %v623, 128
    %640 = vxpose.xlu0.b32.cont [7/16] %v624, 128
    %641 = vxpose.xlu0.b32.cont [8/16] %v625, 128
    %642 = vxpose.xlu0.b32.cont [9/16] %v626, 128
    %643 = vxpose.xlu0.b32.cont [10/16] %v627, 128
    %644 = vxpose.xlu0.b32.cont [11/16] %v628, 128
    %645 = vxpose.xlu0.b32.cont [12/16] %v629, 128
    %646 = vxpose.xlu0.b32.cont [13/16] %v630, 128
    %647 = vxpose.xlu0.b32.cont [14/16] %v631, 128
    %648 = vxpose.xlu0.b32.cont [15/16] %v632, 128
    %649 = vxpose.xlu0.b32.end [16/16] %v633, 128
    %v650 = vpop.trf.xlu0
    %v651 = vpop.trf.xlu0
    %v652 = vpop.trf.xlu0
    %v653 = vpop.trf.xlu0
    %v654 = vpop.trf.xlu0
    %v655 = vpop.trf.xlu0
    %v656 = vpop.trf.xlu0
    %v657 = vpop.trf.xlu0
    %v658 = vpop.trf.xlu0
    %v659 = vpop.trf.xlu0
    %v660 = vpop.trf.xlu0
    %v661 = vpop.trf.xlu0
    %v662 = vpop.trf.xlu0
    %v663 = vpop.trf.xlu0
    %v664 = vpop.trf.xlu0
    %v665 = vpop.trf.xlu0
    %v666 = vld [vmem:[%s4] sm:$0xff]
    %v667 = vld [vmem:[%s4 + $0x8] sm:$0xff]
    %v668 = vld [vmem:[%s4 + $0x10] sm:$0xff]
    %v669 = vld [vmem:[%s4 + $0x18] sm:$0xff]
    %v670 = vld [vmem:[%s4 + $0x20] sm:$0xff]
    %v671 = vld [vmem:[%s4 + $0x28] sm:$0xff]
    %v672 = vld [vmem:[%s4 + $0x30] sm:$0xff]
    %v673 = vld [vmem:[%s4 + $0x38] sm:$0xff]
    %v674 = vld [vmem:[%s4 + $0x40] sm:$0xff]
    %v675 = vld [vmem:[%s4 + $0x48] sm:$0xff]
    %v676 = vld [vmem:[%s4 + $0x50] sm:$0xff]
    %v677 = vld [vmem:[%s4 + $0x58] sm:$0xff]
    %v678 = vld [vmem:[%s4 + $0x60] sm:$0xff]
    %v679 = vld [vmem:[%s4 + $0x68] sm:$0xff]
    %v680 = vld [vmem:[%s4 + $0x70] sm:$0xff]
    %v681 = vld [vmem:[%s4 + $0x78] sm:$0xff]
    %683 = vset.pattern.permute.xlu0 0
    %684 = vperm.xlu0 %683, %v666
    %v685 = vpop.permute.xlu0 %684
    %688 = vset.pattern.permute.xlu0 0
    %689 = vperm.xlu0 %688, %v667
    %v690 = vpop.permute.xlu0 %689
    %693 = vset.pattern.permute.xlu0 0
    %694 = vperm.xlu0 %693, %v668
    %v695 = vpop.permute.xlu0 %694
    %698 = vset.pattern.permute.xlu0 0
    %699 = vperm.xlu0 %698, %v669
    %v700 = vpop.permute.xlu0 %699
    %703 = vset.pattern.permute.xlu0 0
    %704 = vperm.xlu0 %703, %v670
    %v705 = vpop.permute.xlu0 %704
    %708 = vset.pattern.permute.xlu0 0
    %709 = vperm.xlu0 %708, %v671
    %v710 = vpop.permute.xlu0 %709
    %713 = vset.pattern.permute.xlu0 0
    %714 = vperm.xlu0 %713, %v672
    %v715 = vpop.permute.xlu0 %714
    %718 = vset.pattern.permute.xlu0 0
    %719 = vperm.xlu0 %718, %v673
    %v720 = vpop.permute.xlu0 %719
    %723 = vset.pattern.permute.xlu0 0
    %724 = vperm.xlu0 %723, %v674
    %v725 = vpop.permute.xlu0 %724
    %728 = vset.pattern.permute.xlu0 0
    %729 = vperm.xlu0 %728, %v675
    %v730 = vpop.permute.xlu0 %729
    %733 = vset.pattern.permute.xlu0 0
    %734 = vperm.xlu0 %733, %v676
    %v735 = vpop.permute.xlu0 %734
    %738 = vset.pattern.permute.xlu0 0
    %739 = vperm.xlu0 %738, %v677
    %v740 = vpop.permute.xlu0 %739
    %743 = vset.pattern.permute.xlu0 0
    %744 = vperm.xlu0 %743, %v678
    %v745 = vpop.permute.xlu0 %744
    %748 = vset.pattern.permute.xlu0 0
    %749 = vperm.xlu0 %748, %v679
    %v750 = vpop.permute.xlu0 %749
    %753 = vset.pattern.permute.xlu0 0
    %754 = vperm.xlu0 %753, %v680
    %v755 = vpop.permute.xlu0 %754
    %758 = vset.pattern.permute.xlu0 0
    %759 = vperm.xlu0 %758, %v681
    %v760 = vpop.permute.xlu0 %759
    %v762 = vmul.f32 %v650, %v685
    %v763 = vmul.f32 %v651, %v690
    %v764 = vmul.f32 %v652, %v695
    %v765 = vmul.f32 %v653, %v700
    %v766 = vmul.f32 %v654, %v705
    %v767 = vmul.f32 %v655, %v710
    %v768 = vmul.f32 %v656, %v715
    %v769 = vmul.f32 %v657, %v720
    %v770 = vmul.f32 %v658, %v725
    %v771 = vmul.f32 %v659, %v730
    %v772 = vmul.f32 %v660, %v735
    %v773 = vmul.f32 %v661, %v740
    %v774 = vmul.f32 %v662, %v745
    %v775 = vmul.f32 %v663, %v750
    %v776 = vmul.f32 %v664, %v755
    %v777 = vmul.f32 %v665, %v760
    %v778 = vadd.f32 %v762, %v763
    %v779 = vadd.f32 %v778, %v764
    %v780 = vadd.f32 %v779, %v765
    %v781 = vadd.f32 %v780, %v766
    %v782 = vadd.f32 %v781, %v767
    %v783 = vadd.f32 %v782, %v768
    %v784 = vadd.f32 %v783, %v769
    %v785 = vadd.f32 %v784, %v770
    %v786 = vadd.f32 %v785, %v771
    %v787 = vadd.f32 %v786, %v772
    %v788 = vadd.f32 %v787, %v773
    %v789 = vadd.f32 %v788, %v774
    %v790 = vadd.f32 %v789, %v775
    %v791 = vadd.f32 %v790, %v776
    %v792 = vadd.f32 %v791, %v777
    %v793 = vrot.slane %v792, 4
    %v794 = vadd.f32 %v792, %v793
    %v795 = vrot.slane %v794, 2
    %v796 = vadd.f32 %v794, %v795
    %v797 = vrot.slane %v796, 1
    %v798 = vadd.f32 %v796, %v797
    %800 = vset.pattern.permute.xlu0 0
    %801 = vperm.xlu0 %800, %v36
    %v802 = vpop.permute.xlu0 %801
    %v804 = vadd.f32 %v798, %v802
    %805 = vst [vmem:[#allocation5 - $0x3] sm:$0x8] %v804
    // Predicated region
    $region30: #{tpu_custom_call.1} parent=1 // pred_check
      _
    $region31: #{tpu_custom_call.1} parent=1 // pred_check_branch
      %807 = sbr.rel (0) target = $region33
    $region32: #{tpu_custom_call.1} parent=1 // pred_region
      %s809 = ssub.s32 16, 16
      %810 = vsyncadd [#allocation4], %s809
      %s812 = sshll.u32 [#allocation5], 4
      %s813 = int_to_ptr.vmem [resolvable:$true] %s812
      %815 = dma.vmem_to_hbm [thread:$0]  %s813, 16, %s6, [#allocation4]
    $region33: #{tpu_custom_call.1} parent=1 // pred_fallthru
      _
    // Predicated region
    $region34: #{tpu_custom_call.1} parent=1 // pred_check
      _
    $region35: #{tpu_custom_call.1} parent=1 // pred_check_branch
      %817 = sbr.rel (0) target = $region37
    $region36: #{tpu_custom_call.1} parent=1 // pred_region
      %818 = dma.done [#allocation4], 16
    $region37: #{tpu_custom_call.1} parent=1 // pred_fallthru
      _
    %819 = vsyncpa [#allocation3], 1
    %820 = vsyncpa [#allocation4], 1

</llo_original>
